<compile_context>
chip_gen: v6e
topology: v6e:2x2x1
jax: 0.10.0
libtpu: 0.0.40
codegen_flags: <defaults>
</compile_context>

<pallas_src>
import functools
import itertools

import numpy as np
import jax
import jax.numpy as jnp
from jax import lax
from jax.experimental import pallas as pl
from jax.experimental.pallas import tpu as pltpu

try:  # exact Hungarian if scipy is available; tiny brute-force fallback otherwise
    from scipy.optimize import linear_sum_assignment as _scipy_lsa
except Exception:  # pragma: no cover
    _scipy_lsa = None


def _cdiv(a: int, b: int) -> int:
    return -(-a // b)


def _round_up(x: int, m: int) -> int:
    return _cdiv(x, m) * m


def _cost_kernel(tgt_ref, pred_t_ref, c_ref, *, w_bbox, w_giou):
    """Transposed matching-cost block for B_TILE batch elements.

    tgt_ref    : [b_tile, tile_t, 4]  target boxes (x0, y0, x1, y1), targets on sublanes
    pred_t_ref : [b_tile, 4, tile_q]  predicted boxes transposed, queries on lanes
    c_ref      : [b_tile, tile_t, tile_q]  C^T = w_bbox*L1 - w_giou*clamp(GIoU, -1, 1)
    """
    b_tile, tile_t, tile_q = c_ref.shape
    shape = (tile_t, tile_q)

    def one_batch(b, carry):
        tb = tgt_ref[b]        # [tile_t, 4]
        pt = pred_t_ref[b]     # [4, tile_q]

        # ---- L1 cdist (torch.cdist p=1) on the UNCLAMPED boxes ----
        # Each coordinate pair is consumed exactly once, so implicit
        # [T,1] x [1,Q] broadcasting is already minimal here.
        cb = (jnp.abs(tb[:, 0:1] - pt[0:1, :]) + jnp.abs(tb[:, 1:2] - pt[1:2, :])
              + jnp.abs(tb[:, 2:3] - pt[2:3, :]) + jnp.abs(tb[:, 3:4] - pt[3:4, :]))

        # ---- Generalized IoU on boxes clamped to [0, 1] ----
        # Clamp on the narrow shapes, then broadcast each coordinate to the full tile
        # exactly once (each feeds both the intersection and the enclosing box).
        # x-direction first, then y, to bound live full-tile temporaries.
        tbc = jnp.clip(tb, 0.0, 1.0)
        ptc = jnp.clip(pt, 0.0, 1.0)

        area_t = (tbc[:, 2:3] - tbc[:, 0:1]) * (tbc[:, 3:4] - tbc[:, 1:2])   # [tile_t, 1]
        area_p = (ptc[2:3, :] - ptc[0:1, :]) * (ptc[3:4, :] - ptc[1:2, :])   # [1, tile_q]
        area_sum = jnp.broadcast_to(area_t, shape) + jnp.broadcast_to(area_p, shape)

        tx0 = jnp.broadcast_to(tbc[:, 0:1], shape)
        tx1 = jnp.broadcast_to(tbc[:, 2:3], shape)
        px0 = jnp.broadcast_to(ptc[0:1, :], shape)
        px1 = jnp.broadcast_to(ptc[2:3, :], shape)
        iw = jnp.maximum(jnp.minimum(tx1, px1) - jnp.maximum(tx0, px0), 0.0)
        ew = jnp.maximum(jnp.maximum(tx1, px1) - jnp.minimum(tx0, px0), 0.0)

        ty0 = jnp.broadcast_to(tbc[:, 1:2], shape)
        ty1 = jnp.broadcast_to(tbc[:, 3:4], shape)
        py0 = jnp.broadcast_to(ptc[1:2, :], shape)
        py1 = jnp.broadcast_to(ptc[3:4, :], shape)
        ih = jnp.maximum(jnp.minimum(ty1, py1) - jnp.maximum(ty0, py0), 0.0)
        eh = jnp.maximum(jnp.maximum(ty1, py1) - jnp.minimum(ty0, py0), 0.0)

        inter = iw * ih
        earea = ew * eh
        union = area_sum - inter

        # Exact divides (not approx reciprocal): 0/0 -> NaN exactly like the torch
        # reference (then NaN -> 1e5), and near-tied costs keep the same assignment.
        iou = inter / union
        giou = iou - (earea - union) / earea

        c = w_bbox * cb - w_giou * jnp.clip(giou, -1.0, 1.0)
        c = jnp.where(jnp.isnan(c), 100000.0, c)
        c_ref[b] = c
        return carry

    lax.fori_loop(0, b_tile, one_batch, 0, unroll=True)


@functools.partial(jax.jit,
                   static_argnames=("cost_bbox", "cost_giou", "tile_q", "tile_t", "b_tile"))
def _matching_cost_jit(pred_boxes, boxes, *, cost_bbox, cost_giou, tile_q, tile_t, b_tile):
    """pred_boxes: [bs, Q, 4], boxes: [bs, T, 4] -> transposed cost C^T [bs, T, Q] (f32).

    Whole hot path (cast/transpose/pad/pallas_call/trim) lives in one jitted graph so
    there is a single dispatch and no extra HBM round trips.
    """
    pred_boxes = pred_boxes.astype(jnp.float32)
    boxes = boxes.astype(jnp.float32)
    bs, Q, _ = pred_boxes.shape
    T = boxes.shape[1]

    Bp = _round_up(bs, b_tile)
    Qp = _round_up(Q, tile_q)
    Tp = _round_up(T, tile_t)

    # Queries on the 128-lane axis: pass predictions transposed [bs, 4, Q].
    pred_t = jnp.transpose(pred_boxes, (0, 2, 1))
    pred_t = jnp.pad(pred_t, ((0, Bp - bs), (0, 0), (0, Qp - Q)))
    tgt = jnp.pad(boxes, ((0, Bp - bs), (0, Tp - T), (0, 0)))

    kernel = functools.partial(_cost_kernel, w_bbox=float(cost_bbox), w_giou=float(cost_giou))
    grid = (Bp // b_tile, Tp // tile_t, Qp // tile_q)

    c_t = pl.pallas_call(
        kernel,
        out_shape=jax.ShapeDtypeStruct((Bp, Tp, Qp), jnp.float32),
        grid=grid,
        in_specs=[
            pl.BlockSpec((b_tile, tile_t, 4), lambda bi, ti, qi: (bi, ti, 0)),
            pl.BlockSpec((b_tile, 4, tile_q), lambda bi, ti, qi: (bi, 0, qi)),
        ],
        out_specs=pl.BlockSpec((b_tile, tile_t, tile_q), lambda bi, ti, qi: (bi, ti, qi)),
        compiler_params=pltpu.CompilerParams(
            dimension_semantics=("parallel", "parallel", "parallel"),
            vmem_limit_bytes=32 * 1024 * 1024,   # valid headroom on v5e/v6e/v7x
        ),
    )(tgt, pred_t)

    # Trim inside the jitted graph so XLA fuses the slice with the copy-out.
    return c_t[:bs, :T, :Q]


# Tile caps keep (double-buffered blocks + in-kernel full-tile temporaries) comfortably
# under every generation's scoped-VMEM default (v5e 16 MiB, v6e/v7x 32 MiB; v7x has only
# 64 MiB physical). Output block <= 2 MiB f32 per buffer.
_MAX_TILE_Q = 1024
_MAX_TILE_T = 128
_MAX_OUT_BLOCK_ELEMS = 512 * 1024      # 2 MiB of f32 per output buffer


def pallas_matching_cost(pred_boxes, boxes, *, cost_bbox=1.0, cost_giou=1.0):
    """Per-batch transposed matching cost C^T [bs, T, Q] (only blocks the assignment reads)."""
    bs, Q, _ = pred_boxes.shape
    T = boxes.shape[1]

    tile_q = min(_round_up(max(Q, 1), 128), _MAX_TILE_Q)   # lane axis, multiple of 128
    tile_t = min(_round_up(max(T, 1), 8), _MAX_TILE_T)     # sublane axis, multiple of 8

    # Fold several batch elements into one block so small per-batch problems don't
    # degenerate into many tiny grid steps (~0.35 us fixed overhead each).
    b_tile = max(1, min(bs, 8, _MAX_OUT_BLOCK_ELEMS // (tile_t * tile_q)))

    # v7x megacore: keep >= 2 grid steps when bs >= 2 so both TensorCores get work
    # (no-op cost on the single-TC v5e/v6e beyond one extra tiny step).
    q_blocks = _cdiv(max(Q, 1), tile_q)
    t_blocks = _cdiv(max(T, 1), tile_t)
    if bs > 1 and q_blocks * t_blocks * _cdiv(bs, b_tile) < 2:
        b_tile = min(b_tile, _cdiv(bs, 2))

    return _matching_cost_jit(pred_boxes, boxes,
                              cost_bbox=float(cost_bbox), cost_giou=float(cost_giou),
                              tile_q=tile_q, tile_t=tile_t, b_tile=b_tile)


def _linear_sum_assignment(cost):
    """Host-side assignment (combinatorial; no Pallas equivalent)."""
    cost = np.asarray(cost)
    if _scipy_lsa is not None:
        ri, ci = _scipy_lsa(cost)
        return np.asarray(ri, dtype=np.int64), np.asarray(ci, dtype=np.int64)
    # TODO(synk): brute-force fallback is O(min(n,m)!) — only for tiny matrices when scipy is absent.
    n, m = cost.shape
    if n <= m:
        best, best_cols = None, None
        for cols in itertools.permutations(range(m), n):
            tot = sum(cost[i, c] for i, c in enumerate(cols))
            if best is None or tot < best:
                best, best_cols = tot, cols
        return np.arange(n, dtype=np.int64), np.array(best_cols, dtype=np.int64)
    best, best_rows = None, None
    for rows in itertools.permutations(range(n), m):
        tot = sum(cost[r, j] for j, r in enumerate(rows))
        if best is None or tot < best:
            best, best_rows = tot, rows
    rows = np.array(best_rows, dtype=np.int64)
    cols = np.arange(m, dtype=np.int64)
    order = np.argsort(rows)
    return rows[order], cols[order]


class HungarianMatcher:
    def __init__(self, cost_class: float = 1.0, cost_bbox: float = 1.0, cost_giou: float = 1.0):
        assert cost_class != 0 or cost_bbox != 0 or cost_giou != 0, "all costs cant be 0"
        # TODO(synk): this forward takes no logits (matches the reference signature), so the
        # classification term is never added; cost_class is kept for API parity only.
        self.cost_class = cost_class
        self.cost_bbox = cost_bbox
        self.cost_giou = cost_giou

    def __call__(self, pred_boxes, boxes):
        """pred_boxes: [bs, num_queries, 4], boxes: [bs, num_targets, 4] (xyxy)."""
        bs = pred_boxes.shape[0]

        # Hot path: per-batch transposed cost blocks from the jitted Pallas kernel;
        # single device->host transfer of exactly [bs, T, Q] values.
        c_t = pallas_matching_cost(pred_boxes, boxes,
                                   cost_bbox=self.cost_bbox, cost_giou=self.cost_giou)
        c_t = np.asarray(jax.block_until_ready(c_t))   # [bs, T, Q]

        indices = []
        for i in range(bs):
            c_i = c_t[i].T   # [Q, T] — free host-side transpose (numpy view)
            ri, ci = _linear_sum_assignment(c_i)
            indices.append((np.asarray(ri, dtype=np.int64), np.asarray(ci, dtype=np.int64)))
        return indices


def _reference_cost_t(pred_boxes, boxes, w_bbox, w_giou):
    """Pure-JAX reference of the per-batch transposed cost, for validation."""
    pb = pred_boxes.astype(jnp.float32)   # [bs, Q, 4]
    tb = boxes.astype(jnp.float32)        # [bs, T, 4]
    cb = jnp.sum(jnp.abs(pb[:, :, None, :] - tb[:, None, :, :]), axis=-1)      # [bs, Q, T]
    p = jnp.clip(pb, 0.0, 1.0)
    t = jnp.clip(tb, 0.0, 1.0)
    area_p = (p[..., 2] - p[..., 0]) * (p[..., 3] - p[..., 1])                  # [bs, Q]
    area_t = (t[..., 2] - t[..., 0]) * (t[..., 3] - t[..., 1])                  # [bs, T]
    lt = jnp.maximum(p[:, :, None, :2], t[:, None, :, :2])
    rb = jnp.minimum(p[:, :, None, 2:], t[:, None, :, 2:])
    wh = jnp.clip(rb - lt, 0.0, None)
    inter = wh[..., 0] * wh[..., 1]
    union = area_p[:, :, None] + area_t[:, None, :] - inter
    iou = inter / union
    elt = jnp.minimum(p[:, :, None, :2], t[:, None, :, :2])
    erb = jnp.maximum(p[:, :, None, 2:], t[:, None, :, 2:])
    ewh = jnp.clip(erb - elt, 0.0, None)
    earea = ewh[..., 0] * ewh[..., 1]
    giou = iou - (earea - union) / earea
    c = w_bbox * cb - w_giou * jnp.clip(giou, -1.0, 1.0)
    c = jnp.where(jnp.isnan(c), 100000.0, c)
    return jnp.transpose(c, (0, 2, 1))   # [bs, T, Q]


def _make_boxes(key, bs, num_queries, num_targets):
    k1, k2, k3, k4 = jax.random.split(key, 4)
    # Predicted boxes in xyxy (may fall slightly outside [0,1]; matcher clamps for GIoU).
    p_lo = jax.random.uniform(k1, (bs, num_queries, 2), minval=-0.1, maxval=0.7)
    p_wh = jax.random.uniform(k2, (bs, num_queries, 2), minval=0.05, maxval=0.5)
    pred_boxes = jnp.concatenate([p_lo, p_lo + p_wh], axis=-1).astype(jnp.float32)
    # Target boxes in xyxy with x1>=x0, y1>=y0 (required by the reference assert).
    t_lo = jax.random.uniform(k3, (bs, num_targets, 2), minval=0.0, maxval=0.6)
    t_wh = jax.random.uniform(k4, (bs, num_targets, 2), minval=0.05, maxval=0.4)
    boxes = jnp.concatenate([t_lo, jnp.clip(t_lo + t_wh, 0.0, 1.0)], axis=-1).astype(jnp.float32)
    return pred_boxes, boxes


if __name__ == "__main__":
    key = jax.random.PRNGKey(0)
    k_small, k_med = jax.random.split(key, 2)

    # --- small end-to-end case (matcher) ---
    bs, num_queries, num_targets = 2, 8, 2
    pred_boxes, boxes = _make_boxes(k_small, bs, num_queries, num_targets)

    c_kernel = pallas_matching_cost(pred_boxes, boxes, cost_bbox=1.0, cost_giou=1.0)
    jax.block_until_ready(c_kernel)
    c_ref = _reference_cost_t(pred_boxes, boxes, 1.0, 1.0)
    np.testing.assert_allclose(np.asarray(c_kernel), np.asarray(c_ref), rtol=1e-5, atol=1e-5)
    assert c_kernel.shape == (bs, num_targets, num_queries)

    matcher = HungarianMatcher(cost_class=1.0, cost_bbox=1.0, cost_giou=1.0)
    indices = matcher(pred_boxes, boxes)
    assert len(indices) == bs
    for ri, ci in indices:
        assert ri.shape[0] == min(num_queries, num_targets)
        assert ci.shape[0] == min(num_queries, num_targets)

    # --- secondary cost-only check: exercises batch folding + query/target padding ---
    bs2, q2, t2 = 3, 160, 12
    pred2, boxes2 = _make_boxes(k_med, bs2, q2, t2)
    c2 = pallas_matching_cost(pred2, boxes2, cost_bbox=1.0, cost_giou=1.0)
    jax.block_until_ready(c2)
    c2_ref = _reference_cost_t(pred2, boxes2, 1.0, 1.0)
    np.testing.assert_allclose(np.asarray(c2), np.asarray(c2_ref), rtol=1e-5, atol=1e-5)
    assert c2.shape == (bs2, t2, q2)

    print("KERNEL_OK")
</pallas_src>

<mosaic_0001>
module attributes {stable_mosaic.version = 11 : i64} {
  func.func @_cost_kernel(%arg0: i32, %arg1: i32, %arg2: i32, %arg3: memref<1x8x4xf32, #tpu.memory_space<vmem>>, %arg4: memref<1x4x128xf32, #tpu.memory_space<vmem>>, %arg5: memref<1x8x128xf32, #tpu.memory_space<vmem>>) attributes {dimension_semantics = [#tpu.dimension_semantics<parallel>, #tpu.dimension_semantics<parallel>, #tpu.dimension_semantics<parallel>], iteration_bounds = array<i64: 2, 1, 1>, scalar_prefetch = 0 : i64, scratch_operands = 0 : i64, tpu.core_type = #tpu.core_type<tc>, window_params = [{transform_indices = @transform_0, window_bounds = array<i64: 1, 8, 4>}, {transform_indices = @transform_1, window_bounds = array<i64: 1, 4, 128>}, {transform_indices = @transform_2, window_bounds = array<i64: 1, 8, 128>}]} {
    %c0_i32 = arith.constant 0 : i32
    %0 = arith.index_cast %c0_i32 : i32 to index
    %c0 = arith.constant 0 : index
    %c0_0 = arith.constant 0 : index
    %1 = vector.load %arg3[%0, %c0, %c0_0] : memref<1x8x4xf32, #tpu.memory_space<vmem>>, vector<1x8x4xf32>
    %2 = vector.shape_cast %1 : vector<1x8x4xf32> to vector<8x4xf32>
    %3 = arith.index_cast %c0_i32 : i32 to index
    %c0_1 = arith.constant 0 : index
    %c0_2 = arith.constant 0 : index
    %4 = vector.load %arg4[%3, %c0_1, %c0_2] : memref<1x4x128xf32, #tpu.memory_space<vmem>>, vector<1x4x128xf32>
    %5 = vector.shape_cast %4 : vector<1x4x128xf32> to vector<4x128xf32>
    %6 = vector.extract_strided_slice %2 {offsets = [0, 0], sizes = [8, 1], strides = [1, 1]} : vector<8x4xf32> to vector<8x1xf32>
    %7 = vector.extract_strided_slice %5 {offsets = [0, 0], sizes = [1, 128], strides = [1, 1]} : vector<4x128xf32> to vector<1x128xf32>
    %8 = vector.broadcast %6 : vector<8x1xf32> to vector<8x128xf32>
    %9 = vector.broadcast %7 : vector<1x128xf32> to vector<8x128xf32>
    %10 = arith.subf %8, %9 : vector<8x128xf32>
    %11 = math.absf %10 : vector<8x128xf32>
    %12 = vector.extract_strided_slice %2 {offsets = [0, 1], sizes = [8, 1], strides = [1, 1]} : vector<8x4xf32> to vector<8x1xf32>
    %13 = vector.extract_strided_slice %5 {offsets = [1, 0], sizes = [1, 128], strides = [1, 1]} : vector<4x128xf32> to vector<1x128xf32>
    %14 = vector.broadcast %12 : vector<8x1xf32> to vector<8x128xf32>
    %15 = vector.broadcast %13 : vector<1x128xf32> to vector<8x128xf32>
    %16 = arith.subf %14, %15 : vector<8x128xf32>
    %17 = math.absf %16 : vector<8x128xf32>
    %18 = arith.addf %11, %17 : vector<8x128xf32>
    %19 = vector.extract_strided_slice %2 {offsets = [0, 2], sizes = [8, 1], strides = [1, 1]} : vector<8x4xf32> to vector<8x1xf32>
    %20 = vector.extract_strided_slice %5 {offsets = [2, 0], sizes = [1, 128], strides = [1, 1]} : vector<4x128xf32> to vector<1x128xf32>
    %21 = vector.broadcast %19 : vector<8x1xf32> to vector<8x128xf32>
    %22 = vector.broadcast %20 : vector<1x128xf32> to vector<8x128xf32>
    %23 = arith.subf %21, %22 : vector<8x128xf32>
    %24 = math.absf %23 : vector<8x128xf32>
    %25 = arith.addf %18, %24 : vector<8x128xf32>
    %26 = vector.extract_strided_slice %2 {offsets = [0, 3], sizes = [8, 1], strides = [1, 1]} : vector<8x4xf32> to vector<8x1xf32>
    %27 = vector.extract_strided_slice %5 {offsets = [3, 0], sizes = [1, 128], strides = [1, 1]} : vector<4x128xf32> to vector<1x128xf32>
    %28 = vector.broadcast %26 : vector<8x1xf32> to vector<8x128xf32>
    %29 = vector.broadcast %27 : vector<1x128xf32> to vector<8x128xf32>
    %30 = arith.subf %28, %29 : vector<8x128xf32>
    %31 = math.absf %30 : vector<8x128xf32>
    %32 = arith.addf %25, %31 : vector<8x128xf32>
    %cst = arith.constant 0.000000e+00 : f32
    %cst_3 = arith.constant 1.000000e+00 : f32
    %33 = vector.broadcast %cst : f32 to vector<8x4xf32>
    %34 = arith.maximumf %33, %2 : vector<8x4xf32>
    %35 = vector.broadcast %cst_3 : f32 to vector<8x4xf32>
    %36 = arith.minimumf %35, %34 : vector<8x4xf32>
    %cst_4 = arith.constant 0.000000e+00 : f32
    %cst_5 = arith.constant 1.000000e+00 : f32
    %37 = vector.broadcast %cst_4 : f32 to vector<4x128xf32>
    %38 = arith.maximumf %37, %5 : vector<4x128xf32>
    %39 = vector.broadcast %cst_5 : f32 to vector<4x128xf32>
    %40 = arith.minimumf %39, %38 : vector<4x128xf32>
    %41 = vector.extract_strided_slice %36 {offsets = [0, 2], sizes = [8, 1], strides = [1, 1]} : vector<8x4xf32> to vector<8x1xf32>
    %42 = vector.extract_strided_slice %36 {offsets = [0, 0], sizes = [8, 1], strides = [1, 1]} : vector<8x4xf32> to vector<8x1xf32>
    %43 = arith.subf %41, %42 : vector<8x1xf32>
    %44 = vector.extract_strided_slice %36 {offsets = [0, 3], sizes = [8, 1], strides = [1, 1]} : vector<8x4xf32> to vector<8x1xf32>
    %45 = vector.extract_strided_slice %36 {offsets = [0, 1], sizes = [8, 1], strides = [1, 1]} : vector<8x4xf32> to vector<8x1xf32>
    %46 = arith.subf %44, %45 : vector<8x1xf32>
    %47 = arith.mulf %43, %46 : vector<8x1xf32>
    %48 = vector.extract_strided_slice %40 {offsets = [2, 0], sizes = [1, 128], strides = [1, 1]} : vector<4x128xf32> to vector<1x128xf32>
    %49 = vector.extract_strided_slice %40 {offsets = [0, 0], sizes = [1, 128], strides = [1, 1]} : vector<4x128xf32> to vector<1x128xf32>
    %50 = arith.subf %48, %49 : vector<1x128xf32>
    %51 = vector.extract_strided_slice %40 {offsets = [3, 0], sizes = [1, 128], strides = [1, 1]} : vector<4x128xf32> to vector<1x128xf32>
    %52 = vector.extract_strided_slice %40 {offsets = [1, 0], sizes = [1, 128], strides = [1, 1]} : vector<4x128xf32> to vector<1x128xf32>
    %53 = arith.subf %51, %52 : vector<1x128xf32>
    %54 = arith.mulf %50, %53 : vector<1x128xf32>
    %55 = vector.shape_cast %47 : vector<8x1xf32> to vector<8x1xf32>
    %56 = vector.broadcast %55 : vector<8x1xf32> to vector<8x128xf32>
    %57 = vector.shape_cast %54 : vector<1x128xf32> to vector<1x128xf32>
    %58 = vector.broadcast %57 : vector<1x128xf32> to vector<8x128xf32>
    %59 = arith.addf %56, %58 : vector<8x128xf32>
    %60 = vector.extract_strided_slice %36 {offsets = [0, 0], sizes = [8, 1], strides = [1, 1]} : vector<8x4xf32> to vector<8x1xf32>
    %61 = vector.shape_cast %60 : vector<8x1xf32> to vector<8x1xf32>
    %62 = vector.broadcast %61 : vector<8x1xf32> to vector<8x128xf32>
    %63 = vector.extract_strided_slice %36 {offsets = [0, 2], sizes = [8, 1], strides = [1, 1]} : vector<8x4xf32> to vector<8x1xf32>
    %64 = vector.shape_cast %63 : vector<8x1xf32> to vector<8x1xf32>
    %65 = vector.broadcast %64 : vector<8x1xf32> to vector<8x128xf32>
    %66 = vector.extract_strided_slice %40 {offsets = [0, 0], sizes = [1, 128], strides = [1, 1]} : vector<4x128xf32> to vector<1x128xf32>
    %67 = vector.shape_cast %66 : vector<1x128xf32> to vector<1x128xf32>
    %68 = vector.broadcast %67 : vector<1x128xf32> to vector<8x128xf32>
    %69 = vector.extract_strided_slice %40 {offsets = [2, 0], sizes = [1, 128], strides = [1, 1]} : vector<4x128xf32> to vector<1x128xf32>
    %70 = vector.shape_cast %69 : vector<1x128xf32> to vector<1x128xf32>
    %71 = vector.broadcast %70 : vector<1x128xf32> to vector<8x128xf32>
    %72 = arith.minimumf %65, %71 : vector<8x128xf32>
    %73 = arith.maximumf %62, %68 : vector<8x128xf32>
    %74 = arith.subf %72, %73 : vector<8x128xf32>
    %cst_6 = arith.constant 0.000000e+00 : f32
    %75 = vector.broadcast %cst_6 : f32 to vector<8x128xf32>
    %76 = arith.maximumf %74, %75 : vector<8x128xf32>
    %77 = arith.maximumf %65, %71 : vector<8x128xf32>
    %78 = arith.minimumf %62, %68 : vector<8x128xf32>
    %79 = arith.subf %77, %78 : vector<8x128xf32>
    %cst_7 = arith.constant 0.000000e+00 : f32
    %80 = vector.broadcast %cst_7 : f32 to vector<8x128xf32>
    %81 = arith.maximumf %79, %80 : vector<8x128xf32>
    %82 = vector.extract_strided_slice %36 {offsets = [0, 1], sizes = [8, 1], strides = [1, 1]} : vector<8x4xf32> to vector<8x1xf32>
    %83 = vector.shape_cast %82 : vector<8x1xf32> to vector<8x1xf32>
    %84 = vector.broadcast %83 : vector<8x1xf32> to vector<8x128xf32>
    %85 = vector.extract_strided_slice %36 {offsets = [0, 3], sizes = [8, 1], strides = [1, 1]} : vector<8x4xf32> to vector<8x1xf32>
    %86 = vector.shape_cast %85 : vector<8x1xf32> to vector<8x1xf32>
    %87 = vector.broadcast %86 : vector<8x1xf32> to vector<8x128xf32>
    %88 = vector.extract_strided_slice %40 {offsets = [1, 0], sizes = [1, 128], strides = [1, 1]} : vector<4x128xf32> to vector<1x128xf32>
    %89 = vector.shape_cast %88 : vector<1x128xf32> to vector<1x128xf32>
    %90 = vector.broadcast %89 : vector<1x128xf32> to vector<8x128xf32>
    %91 = vector.extract_strided_slice %40 {offsets = [3, 0], sizes = [1, 128], strides = [1, 1]} : vector<4x128xf32> to vector<1x128xf32>
    %92 = vector.shape_cast %91 : vector<1x128xf32> to vector<1x128xf32>
    %93 = vector.broadcast %92 : vector<1x128xf32> to vector<8x128xf32>
    %94 = arith.minimumf %87, %93 : vector<8x128xf32>
    %95 = arith.maximumf %84, %90 : vector<8x128xf32>
    %96 = arith.subf %94, %95 : vector<8x128xf32>
    %cst_8 = arith.constant 0.000000e+00 : f32
    %97 = vector.broadcast %cst_8 : f32 to vector<8x128xf32>
    %98 = arith.maximumf %96, %97 : vector<8x128xf32>
    %99 = arith.maximumf %87, %93 : vector<8x128xf32>
    %100 = arith.minimumf %84, %90 : vector<8x128xf32>
    %101 = arith.subf %99, %100 : vector<8x128xf32>
    %cst_9 = arith.constant 0.000000e+00 : f32
    %102 = vector.broadcast %cst_9 : f32 to vector<8x128xf32>
    %103 = arith.maximumf %101, %102 : vector<8x128xf32>
    %104 = arith.mulf %76, %98 : vector<8x128xf32>
    %105 = arith.mulf %81, %103 : vector<8x128xf32>
    %106 = arith.subf %59, %104 : vector<8x128xf32>
    %107 = arith.divf %104, %106 : vector<8x128xf32>
    %108 = arith.subf %105, %106 : vector<8x128xf32>
    %109 = arith.divf %108, %105 : vector<8x128xf32>
    %110 = arith.subf %107, %109 : vector<8x128xf32>
    %cst_10 = arith.constant 1.000000e+00 : f32
    %111 = vector.broadcast %cst_10 : f32 to vector<8x128xf32>
    %112 = arith.mulf %111, %32 : vector<8x128xf32>
    %cst_11 = arith.constant -1.000000e+00 : f32
    %cst_12 = arith.constant 1.000000e+00 : f32
    %113 = vector.broadcast %cst_11 : f32 to vector<8x128xf32>
    %114 = arith.maximumf %113, %110 : vector<8x128xf32>
    %115 = vector.broadcast %cst_12 : f32 to vector<8x128xf32>
    %116 = arith.minimumf %115, %114 : vector<8x128xf32>
    %cst_13 = arith.constant 1.000000e+00 : f32
    %117 = vector.broadcast %cst_13 : f32 to vector<8x128xf32>
    %118 = arith.mulf %117, %116 : vector<8x128xf32>
    %119 = arith.subf %112, %118 : vector<8x128xf32>
    %120 = arith.cmpf one, %119, %119 : vector<8x128xf32>
    %cst_14 = arith.constant 1.000000e+05 : f32
    %121 = vector.broadcast %cst_14 : f32 to vector<8x128xf32>
    %122 = arith.select %120, %121, %119 : vector<8x128xi1>, vector<8x128xf32>
    %123 = arith.index_cast %c0_i32 : i32 to index
    %c0_15 = arith.constant 0 : index
    %c0_16 = arith.constant 0 : index
    %124 = vector.load %arg5[%123, %c0_15, %c0_16] : memref<1x8x128xf32, #tpu.memory_space<vmem>>, vector<1x8x128xf32>
    %125 = vector.shape_cast %124 : vector<1x8x128xf32> to vector<8x128xf32>
    %126 = vector.shape_cast %122 : vector<8x128xf32> to vector<1x8x128xf32>
    tpu.vector_store %arg5[%123, %c0_15, %c0_16], %126 {strides = array<i32>} : memref<1x8x128xf32, #tpu.memory_space<vmem>>, vector<1x8x128xf32>,
    %c1_i32 = arith.constant 1 : i32
    return
  }
  func.func @transform_0(%arg0: i32, %arg1: i32, %arg2: i32) -> (i32, i32, i32) {
    %c0_i32 = arith.constant 0 : i32
    %c0_i32_0 = arith.constant 0 : i32
    return %arg0, %arg1, %c0_i32 : i32, i32, i32
  }
  func.func @transform_1(%arg0: i32, %arg1: i32, %arg2: i32) -> (i32, i32, i32) {
    %c0_i32 = arith.constant 0 : i32
    %c0_i32_0 = arith.constant 0 : i32
    return %arg0, %c0_i32, %arg2 : i32, i32, i32
  }
  func.func @transform_2(%arg0: i32, %arg1: i32, %arg2: i32) -> (i32, i32, i32) {
    %c0_i32 = arith.constant 0 : i32
    return %arg0, %arg1, %arg2 : i32, i32, i32
  }
}

</mosaic_0001>

<llo_original>
// kernel: _matching_cost_jit.1
$region0: #{_matching_cost_jit.1}
  #allocation0 [shape = 'u32[]', space=smem, size = 0x4, offset = 0x4, fixed_abs, tag = 'smem constant byte address 0x4 - core index']
  #allocation1 [shape = 'u32[144,128]{1,0:T(1,128)}', space=vmem, size = 0x12000, scoped, tag = 'internal scratch']
  %s0 = inlined_call_operand.vmem [shape: f32[2,8,4], index: 0, kind: input, shape index: {}]
  %s1 = inlined_call_operand.vmem [shape: f32[2,4,128], index: 1, kind: input, shape index: {}]
  %s2 = inlined_call_operand.vmem [shape: f32[2,8,128], index: 2, kind: output, shape index: {}]
  %s3 = sld [smem:[#allocation0]]
  $region41: #{_matching_cost_jit.1} parent=0
    _
  %s5 = ssub.s32 1, %s3
  %s6 = scalar_select 0, %s5, %s3
  loop: start=0, step=1, limit=4
  $region2: #{_matching_cost_jit.1} parent=0 // loop_pre_header
    _
  $region3: #{_matching_cost_jit.1} parent=0 // loop_header
    %s8 = sphi 0, %s12
    %p9 = scmp.ge.s32.totalorder %s8, 4
    %s15 = sphi 0, %s34
    %s16 = sphi 0, %s30
    %s17 = sphi 0, %s26
    %s18 = sphi 0, %s15
    %s19 = sphi 0, %s16
    %s20 = sphi 0, %s17
    %s21 = sphi 0, %s18
    %s22 = sphi 0, %s19
    %s23 = sphi 0, %s20
    %s39 = sphi 0, %s41
    %s42 = sphi 0, %s39
    %s43 = sphi 0, %s42
    %s59 = sphi 0, %s43
    %s67 = sphi 0, %s69
    %s70 = sphi 0, %s67
    %s71 = sphi 0, %s70
    %s87 = sphi 0, %s71
    %s97 = sphi 0, %s99
    %s100 = sphi 0, %s97
    %s101 = sphi 0, %s100
    %s117 = sphi 0, %s101
  $region4: #{_matching_cost_jit.1} parent=0 // loop_header_branch
    %11 = sbr.rel (%p9) target = $region8
  $region5: #{_matching_cost_jit.1} parent=0 // loop_body
    %s13 = ssub.s32 %s8, 1
    %s14 = ssub.s32 %s8, 2
    %s24 = sadd.s32 1, %s17
    %p25 = scmp.ge.s32.totalorder %s24, 1
    %s26 = scalar_select %p25, 0, %s24
    %s27 = sadd.s32 1, %s16
    %s28 = scalar_select %p25, %s27, %s16
    %p29 = scmp.ge.s32.totalorder %s28, 1
    %s30 = scalar_select %p29, 0, %s28
    %s31 = sadd.s32 1, %s15
    %s32 = scalar_select %p29, %s31, %s15
    %p33 = scmp.ge.s32.totalorder %s32, 2
    %s34 = scalar_select %p33, 0, %s32
    %s35 = ssub.s32 %s15, %s34
    %s36 = ssub.s32 %s16, %s30
    %s37 = sor.u32 %s35, %s36
    %p38 = scmp.eq.s32.totalorder %s37, 0
    %s40 = sadd.s32 %s39, 1
    %s41 = scalar_select %p38, %s39, %s40
    %p44 = pneg %p38
    %p45 = scmp.eq.s32.totalorder %s8, 1
    %p46 = por %p44, %p45
    %p47 = scmp.ne.s32.totalorder %s39, %s42
    %p48 = scmp.eq.s32.totalorder %s8, 0
    %p49 = por %p47, %p48
    %p50 = scmp.ne.s32.totalorder %s39, %s42
    %p51 = scmp.eq.s32.totalorder %s13, 1
    %p52 = por %p50, %p51
    %p53 = scmp.ne.s32.totalorder %s42, %s43
    %p54 = scmp.eq.s32.totalorder %s13, 0
    %p55 = por %p53, %p54
    %p56 = scmp.ne.s32.totalorder %s42, %s43
    %p57 = scmp.eq.s32.totalorder %s14, 1
    %p58 = por %p56, %p57
    %p60 = scmp.ne.s32.totalorder %s43, %s59
    %p61 = scmp.eq.s32.totalorder %s14, 0
    %p62 = por %p60, %p61
    %s63 = ssub.s32 %s15, %s34
    %s64 = ssub.s32 %s17, %s26
    %s65 = sor.u32 %s63, %s64
    %p66 = scmp.eq.s32.totalorder %s65, 0
    %s68 = sadd.s32 %s67, 1
    %s69 = scalar_select %p66, %s67, %s68
    %p72 = pneg %p66
    %p73 = scmp.eq.s32.totalorder %s8, 1
    %p74 = por %p72, %p73
    %p75 = scmp.ne.s32.totalorder %s67, %s70
    %p76 = scmp.eq.s32.totalorder %s8, 0
    %p77 = por %p75, %p76
    %p78 = scmp.ne.s32.totalorder %s67, %s70
    %p79 = scmp.eq.s32.totalorder %s13, 1
    %p80 = por %p78, %p79
    %p81 = scmp.ne.s32.totalorder %s70, %s71
    %p82 = scmp.eq.s32.totalorder %s13, 0
    %p83 = por %p81, %p82
    %p84 = scmp.ne.s32.totalorder %s70, %s71
    %p85 = scmp.eq.s32.totalorder %s14, 1
    %p86 = por %p84, %p85
    %p88 = scmp.ne.s32.totalorder %s71, %s87
    %p89 = scmp.eq.s32.totalorder %s14, 0
    %p90 = por %p88, %p89
    %s91 = ssub.s32 %s15, %s34
    %s92 = ssub.s32 %s16, %s30
    %s93 = sor.u32 %s91, %s92
    %s94 = ssub.s32 %s17, %s26
    %s95 = sor.u32 %s93, %s94
    %p96 = scmp.eq.s32.totalorder %s95, 0
    %s98 = sadd.s32 %s97, 1
    %s99 = scalar_select %p96, %s97, %s98
    %p102 = pneg %p96
    %p103 = scmp.eq.s32.totalorder %s8, 1
    %p104 = por %p102, %p103
    %p105 = scmp.ne.s32.totalorder %s97, %s100
    %p106 = scmp.eq.s32.totalorder %s8, 0
    %p107 = por %p105, %p106
    %p108 = scmp.ne.s32.totalorder %s97, %s100
    %p109 = scmp.eq.s32.totalorder %s13, 1
    %p110 = por %p108, %p109
    %p111 = scmp.ne.s32.totalorder %s100, %s101
    %p112 = scmp.eq.s32.totalorder %s13, 0
    %p113 = por %p111, %p112
    %p114 = scmp.ne.s32.totalorder %s100, %s101
    %p115 = scmp.eq.s32.totalorder %s14, 1
    %p116 = por %p114, %p115
    %p118 = scmp.ne.s32.totalorder %s101, %s117
    %p119 = scmp.eq.s32.totalorder %s14, 0
    %p120 = por %p118, %p119
    %p121 = scmp.le.s32.totalorder 1, %s8
    %p122 = scmp.lt.s32.totalorder %s8, 3
    %p123 = pnand %p121, %p122
    %p124 = pneg %p123
    // Predicated region
    $region9: #{_matching_cost_jit.1} parent=5 // pred_check
      _
    $region10: #{_matching_cost_jit.1} parent=5 // pred_check_branch
      %126 = sbr.rel (%p123) target = $region12
    $region11: #{_matching_cost_jit.1} parent=5 // pred_region
      %s127 = ssub.s32 %s8, 1
    $region12: #{_matching_cost_jit.1} parent=5 // pred_fallthru
      _
    %p128 = scmp.lt.s32.totalorder %s8, 2
    // Predicated region
    $region13: #{_matching_cost_jit.1} parent=5 // pred_check
      %p129 = pneg %p128
    $region14: #{_matching_cost_jit.1} parent=5 // pred_check_branch
      %131 = sbr.rel (%p129) target = $region16
    $region15: #{_matching_cost_jit.1} parent=5 // pred_region
      // Predicated region
      $region17: #{_matching_cost_jit.1} parent=15 // pred_check
        %p132 = pneg %p49
      $region18: #{_matching_cost_jit.1} parent=15 // pred_check_branch
        %134 = sbr.rel (%p132) target = $region20
      $region19: #{_matching_cost_jit.1} parent=15 // pred_region
        %p135 = scmp.lt.s32.totalorder %s15, 1
        %s136 = scalar_select %p135, %s15, 1
        %p137 = scmp.lt.s32.totalorder %s16, 0
        %s138 = scalar_select %p137, %s16, 0
        %s139 = sadd.s32 %s138, %s136
        %s140 = smul.addr %s139, 8
        %s141 = scalar_lea.vmem %s0, %s140
      $region20: #{_matching_cost_jit.1} parent=15 // pred_fallthru
        _
      // Predicated region
      $region21: #{_matching_cost_jit.1} parent=15 // pred_check
        %p142 = pneg %p77
      $region22: #{_matching_cost_jit.1} parent=15 // pred_check_branch
        %144 = sbr.rel (%p142) target = $region24
      $region23: #{_matching_cost_jit.1} parent=15 // pred_region
        %p145 = scmp.lt.s32.totalorder %s15, 1
        %s146 = scalar_select %p145, %s15, 1
        %p147 = scmp.lt.s32.totalorder %s17, 0
        %s148 = scalar_select %p147, %s17, 0
        %s149 = sadd.s32 %s148, %s146
        %s150 = smul.addr %s149, 4
        %s151 = scalar_lea.vmem %s1, %s150
      $region24: #{_matching_cost_jit.1} parent=15 // pred_fallthru
        _
    $region16: #{_matching_cost_jit.1} parent=5 // pred_fallthru
      _
    %p152 = scmp.le.s32.totalorder 1, %s8
    %p153 = scmp.lt.s32.totalorder %s8, 3
    %p154 = pnand %p152, %p153
    %p155 = pneg %p154
    // Predicated region
    $region25: #{_matching_cost_jit.1} parent=5 // pred_check
      _
    $region26: #{_matching_cost_jit.1} parent=5 // pred_check_branch
      %157 = sbr.rel (%p154) target = $region28
    $region27: #{_matching_cost_jit.1} parent=5 // pred_region
      %s158 = ssub.s32 %s8, 1
      %p159 = scmp.lt.s32.totalorder %s18, 1
      %s160 = scalar_select %p159, %s18, 1
      %p161 = scmp.lt.s32.totalorder %s19, 0
      %s162 = scalar_select %p161, %s19, 0
      %s163 = sadd.s32 %s162, %s160
      %s164 = smul.addr %s163, 8
      %s165 = scalar_lea.vmem %s0, %s164
      %p166 = pneg %p55
      %p167 = pneg %p52
      %p168 = scmp.lt.s32.totalorder %s18, 1
      %s169 = scalar_select %p168, %s18, 1
      %p170 = scmp.lt.s32.totalorder %s20, 0
      %s171 = scalar_select %p170, %s20, 0
      %s172 = sadd.s32 %s171, %s169
      %s173 = smul.addr %s172, 4
      %s174 = scalar_lea.vmem %s1, %s173
      %p175 = pneg %p83
      %p176 = pneg %p80
      %p177 = pneg %p113
      %p178 = pneg %p110
      %p179 = scmp.lt.s32.totalorder %s18, 1
      %s180 = scalar_select %p179, %s18, 1
      %p181 = scmp.lt.s32.totalorder %s19, 0
      %s182 = scalar_select %p181, %s19, 0
      %p183 = scmp.lt.s32.totalorder %s20, 0
      %s184 = scalar_select %p183, %s20, 0
      %s185 = sadd.s32 %s184, %s182
      %s186 = sadd.s32 %s185, %s180
      %s187 = smul.addr %s186, 8
      %s188 = scalar_lea.vmem %s2, %s187
      %p189 = scmp.lt.s32.totalorder %s18, 1
      %s190 = scalar_select %p189, %s18, 1
      %p191 = scmp.lt.s32.totalorder %s19, 0
      %s192 = scalar_select %p191, %s19, 0
      %s193 = sadd.s32 %s192, %s190
      %s194 = smul.addr %s193, 8
      %s195 = scalar_lea.vmem %s0, %s194
      %p196 = scmp.lt.s32.totalorder %s18, 1
      %s197 = scalar_select %p196, %s18, 1
      %p198 = scmp.lt.s32.totalorder %s20, 0
      %s199 = scalar_select %p198, %s20, 0
      %s200 = sadd.s32 %s199, %s197
      %s201 = smul.addr %s200, 4
      %s202 = scalar_lea.vmem %s1, %s201
      %p203 = scmp.lt.s32.totalorder %s18, 1
      %s204 = scalar_select %p203, %s18, 1
      %p205 = scmp.lt.s32.totalorder %s19, 0
      %s206 = scalar_select %p205, %s19, 0
      %p207 = scmp.lt.s32.totalorder %s20, 0
      %s208 = scalar_select %p207, %s20, 0
      %s209 = sadd.s32 %s208, %s206
      %s210 = sadd.s32 %s209, %s204
      %s211 = smul.addr %s210, 8
      %s212 = scalar_lea.vmem %s2, %s211
      %v213 = vld [vmem:[%s195] sm:$0xff]
      %v214 = vld [vmem:[%s202] sm:$0xf]
      %216 = vset.pattern.permute.xlu0 0
      %217 = vperm.xlu0 %216, %v213
      %v218 = vpop.permute.xlu0 %217
      %v220 = vlaneseq
      %v221 = vshrl.u32 %v220, 7
      %v222 = vsub.s32 0, %v221
      %v223 = vrot.slane %v214, %v222
      %v224 = vsub.f32 %v218, %v223
      %v225 = vand.u32 2147483647, %v224
      %226 = vset.pattern.permute.xlu0 1
      %227 = vperm.xlu0 %226, %v213
      %v228 = vpop.permute.xlu0 %227
      %v230 = vlaneseq
      %v231 = vshrl.u32 %v230, 7
      %v232 = vsub.s32 1, %v231
      %v233 = vrot.slane %v214, %v232
      %v234 = vsub.f32 %v228, %v233
      %v235 = vand.u32 2147483647, %v234
      %v236 = vadd.f32 %v225, %v235
      %237 = vset.pattern.permute.xlu0 2
      %238 = vperm.xlu0 %237, %v213
      %v239 = vpop.permute.xlu0 %238
      %v241 = vlaneseq
      %v242 = vshrl.u32 %v241, 7
      %v243 = vsub.s32 2, %v242
      %v244 = vrot.slane %v214, %v243
      %v245 = vsub.f32 %v239, %v244
      %v246 = vand.u32 2147483647, %v245
      %v247 = vadd.f32 %v236, %v246
      %248 = vset.pattern.permute.xlu0 3
      %249 = vperm.xlu0 %248, %v213
      %v250 = vpop.permute.xlu0 %249
      %v252 = vlaneseq
      %v253 = vshrl.u32 %v252, 7
      %v254 = vsub.s32 3, %v253
      %v255 = vrot.slane %v214, %v254
      %v256 = vsub.f32 %v250, %v255
      %v257 = vand.u32 2147483647, %v256
      %v258 = vadd.f32 %v247, %v257
      %v259 = vmax.f32 %v213, 0.0
      %v260 = vmin.f32 %v259, 1.0
      %v261 = vmax.f32 %v214, 0.0
      %v262 = vmin.f32 %v261, 1.0
      %264 = vrot.lane.b32.xlu0 %v260, 2
      %v265 = vpop.permute.xlu0 %264
      %v267 = vsub.f32 %v260, %v265
      %269 = vrot.lane.b32.xlu0 %v267, 127
      %v270 = vpop.permute.xlu0 %269
      %v272 = vmul.f32 %v267, %v270
      %v274 = vrot.slane %v262, 6
      %v276 = vsub.f32 %v262, %v274
      %v278 = vrot.slane %v276, 1
      %v280 = vmul.f32 %v276, %v278
      %282 = vset.pattern.permute.xlu0 2
      %283 = vperm.xlu0 %282, %v272
      %v284 = vpop.permute.xlu0 %283
      %v286 = vlaneseq
      %v287 = vshrl.u32 %v286, 7
      %v288 = vsub.s32 2, %v287
      %v289 = vrot.slane %v280, %v288
      %v290 = vadd.f32 %v284, %v289
      %291 = vset.pattern.permute.xlu0 0
      %292 = vperm.xlu0 %291, %v260
      %v293 = vpop.permute.xlu0 %292
      %295 = vset.pattern.permute.xlu0 2
      %296 = vperm.xlu0 %295, %v260
      %v297 = vpop.permute.xlu0 %296
      %v299 = vlaneseq
      %v300 = vshrl.u32 %v299, 7
      %v301 = vsub.s32 0, %v300
      %v302 = vrot.slane %v262, %v301
      %v303 = vlaneseq
      %v304 = vshrl.u32 %v303, 7
      %v305 = vsub.s32 2, %v304
      %v306 = vrot.slane %v262, %v305
      %v307 = vmin.f32 %v297, %v306
      %v308 = vmax.f32 %v293, %v302
      %v309 = vsub.f32 %v307, %v308
      %v310 = vmax.f32 %v309, 0.0
      %v311 = vmax.f32 %v297, %v306
      %v312 = vmin.f32 %v293, %v302
      %v313 = vsub.f32 %v311, %v312
      %v314 = vmax.f32 %v313, 0.0
      %315 = vset.pattern.permute.xlu0 1
      %316 = vperm.xlu0 %315, %v260
      %v317 = vpop.permute.xlu0 %316
      %319 = vset.pattern.permute.xlu0 3
      %320 = vperm.xlu0 %319, %v260
      %v321 = vpop.permute.xlu0 %320
      %v323 = vlaneseq
      %v324 = vshrl.u32 %v323, 7
      %v325 = vsub.s32 1, %v324
      %v326 = vrot.slane %v262, %v325
      %v327 = vlaneseq
      %v328 = vshrl.u32 %v327, 7
      %v329 = vsub.s32 3, %v328
      %v330 = vrot.slane %v262, %v329
      %v331 = vmin.f32 %v321, %v330
      %v332 = vmax.f32 %v317, %v326
      %v333 = vsub.f32 %v331, %v332
      %v334 = vmax.f32 %v333, 0.0
      %v335 = vmax.f32 %v321, %v330
      %v336 = vmin.f32 %v317, %v326
      %v337 = vsub.f32 %v335, %v336
      %v338 = vmax.f32 %v337, 0.0
      %v339 = vmul.f32 %v310, %v334
      %v340 = vmul.f32 %v314, %v338
      %v341 = vsub.f32 %v290, %v339
      %v342 = vrcp.pop %v341
      %v343 = vmul.f32 %v339, %v342
      %v344 = vsub.f32 %v340, %v341
      %v345 = vrcp.pop %v340
      %v346 = vmul.f32 %v344, %v345
      %v347 = vsub.f32 %v343, %v346
      %v348 = vmax.f32 %v347, -1.0
      %v349 = vmin.f32 %v348, 1.0
      %v350 = vsub.f32 %v258, %v349
      %vm351 = vcmp.ne.f32.partialorder %v350, %v350
      %v352 = vsel %vm351, 100000.0, %v350
      %353 = vst [vmem:[%s212] sm:$0xff] %v352
      %p354 = scmp.lt.s32.totalorder %s18, 1
      %s355 = scalar_select %p354, %s18, 1
      %p356 = scmp.lt.s32.totalorder %s19, 0
      %s357 = scalar_select %p356, %s19, 0
      %p358 = scmp.lt.s32.totalorder %s20, 0
      %s359 = scalar_select %p358, %s20, 0
      %s360 = sadd.s32 %s359, %s357
      %s361 = sadd.s32 %s360, %s355
      %s362 = smul.addr %s361, 8
      %s363 = scalar_lea.vmem %s2, %s362
      // Predicated region
      $region29: #{_matching_cost_jit.1} parent=27 // pred_check
        %p364 = pneg %p110
      $region30: #{_matching_cost_jit.1} parent=27 // pred_check_branch
        %366 = sbr.rel (%p364) target = $region32
      $region31: #{_matching_cost_jit.1} parent=27 // pred_region
        _
      $region32: #{_matching_cost_jit.1} parent=27 // pred_fallthru
        _
    $region28: #{_matching_cost_jit.1} parent=5 // pred_fallthru
      _
    %p367 = scmp.le.s32.totalorder 2, %s8
    // Predicated region
    $region33: #{_matching_cost_jit.1} parent=5 // pred_check
      %p368 = pneg %p367
    $region34: #{_matching_cost_jit.1} parent=5 // pred_check_branch
      %370 = sbr.rel (%p368) target = $region36
    $region35: #{_matching_cost_jit.1} parent=5 // pred_region
      %s371 = ssub.s32 %s8, 2
      // Predicated region
      $region37: #{_matching_cost_jit.1} parent=35 // pred_check
        %p372 = pneg %p116
      $region38: #{_matching_cost_jit.1} parent=35 // pred_check_branch
        %374 = sbr.rel (%p372) target = $region40
      $region39: #{_matching_cost_jit.1} parent=35 // pred_region
        %p375 = scmp.lt.s32.totalorder %s21, 1
        %s376 = scalar_select %p375, %s21, 1
        %p377 = scmp.lt.s32.totalorder %s22, 0
        %s378 = scalar_select %p377, %s22, 0
        %p379 = scmp.lt.s32.totalorder %s23, 0
        %s380 = scalar_select %p379, %s23, 0
        %s381 = sadd.s32 %s380, %s378
        %s382 = sadd.s32 %s381, %s376
        %s383 = smul.addr %s382, 8
        %s384 = scalar_lea.vmem %s2, %s383
      $region40: #{_matching_cost_jit.1} parent=35 // pred_fallthru
        _
    $region36: #{_matching_cost_jit.1} parent=5 // pred_fallthru
      _
  $region6: #{_matching_cost_jit.1} parent=0 // loop_footer
    %s12 = sadd.s32 1, %s8
  $region7: #{_matching_cost_jit.1} parent=0 // loop_footer_branch
    %7 = sbr.rel target = $region3
  $region8: #{_matching_cost_jit.1} parent=0 // loop_exit
    _

</llo_original>
